<compile_context>
chip_gen: v6e
topology: v6e:2x2x1
jax: 0.10.0
libtpu: 0.0.40
codegen_flags: <defaults>
</compile_context>

<pallas_src>
import jax
import jax.numpy as jnp
from jax.experimental import pallas as pl
from jax.experimental.pallas import tpu as pltpu


def domain_pred_kernel(xt_ref, w1_ref, b1_ref, w2_ref, b2_ref, o_ref):
    # fc1 on the MXU: bf16 inputs, f32 accumulation.  Transposed layout keeps
    # the batch axis on lanes end-to-end.
    xt = xt_ref[...].astype(jnp.bfloat16)                              # (H, TB)
    h = jnp.dot(w1_ref[...], xt, preferred_element_type=jnp.float32)   # (H, TB) f32
    h = jnp.maximum(h + b1_ref[...], 0.0)                              # bias + ReLU (VPU)
    # fc_final (hidden -> 1): elementwise multiply + sublane reduction.
    o = jnp.sum(h * w2_ref[...], axis=0, keepdims=True)                # (1, TB) lane-dense
    o_ref[...] = (o + b2_ref[0, 0]).astype(o_ref.dtype)


def domain_pred_forward(x, domain, w1_bf16, b1_col, w2_col, b2, *, tb=256):
    """DomainPred forward.

    x: (B, H) f32; domain: (B,) — part of the module input but unused by the output.
    w1_bf16: (H, H) fc1.weight (torch out x in layout), bf16.
    b1_col:  (H, 1) f32 fc1.bias.
    w2_col:  (H, 1) f32 = fc_final.weight.T.
    b2:      (1, 1) f32 fc_final.bias (lives in SMEM).
    Returns (B, 1) in x.dtype.
    """
    del domain  # domain.unsqueeze(1)/norm in the reference is dead code.
    B, H = x.shape

    # Batch tile: single full tile for small B; otherwise 256-row tiles
    # (multiple of 8 sublanes and 128 lanes -> unmasked stores, full MXU M).
    if B <= tb:
        TB, B_pad = B, B
    else:
        TB = tb
        B_pad = pl.cdiv(B, TB) * TB

    xt = x.T                                        # (H, B): batch on the lane axis
    if B_pad != B:
        xt = jnp.pad(xt, ((0, 0), (0, B_pad - B)))  # padded cols sliced off below

    grid = (B_pad // TB,)

    flops = 2 * H * H * B_pad + 4 * H * B_pad
    bytes_accessed = 2 * H * H + 4 * (H * B_pad + 2 * H + B_pad) + 4

    # VMEM budget: double-buffered x tile + resident bf16 W1 + small columns
    # + output + f32 intermediate headroom.  Clamped below v7x's 64 MiB.
    vmem_est = (2 * H * TB * 4) + (2 * H * H * 2) + (4 * H * 4) + (2 * TB * 4) \
        + (2 * H * TB * 4)
    vmem_limit = int(min(48 * 1024 * 1024, max(16 * 1024 * 1024, 2 * vmem_est)))

    out_row = pl.pallas_call(
        domain_pred_kernel,
        out_shape=jax.ShapeDtypeStruct((1, B_pad), x.dtype),
        grid_spec=pltpu.PrefetchScalarGridSpec(
            num_scalar_prefetch=0,
            grid=grid,
            in_specs=[
                pl.BlockSpec((H, TB), lambda i: (0, i)),    # x^T tile (batch on lanes)
                pl.BlockSpec((H, H), lambda i: (0, 0)),     # fc1.weight, bf16, resident
                pl.BlockSpec((H, 1), lambda i: (0, 0)),     # b1 column
                pl.BlockSpec((H, 1), lambda i: (0, 0)),     # fc_final.weight^T column
                pl.BlockSpec(memory_space=pltpu.MemorySpace.SMEM),  # b2 scalar
            ],
            out_specs=pl.BlockSpec((1, TB), lambda i: (0, i)),
        ),
        compiler_params=pltpu.CompilerParams(
            dimension_semantics=("parallel",),
            vmem_limit_bytes=vmem_limit,
        ),
        cost_estimate=pl.CostEstimate(
            flops=flops, transcendentals=0, bytes_accessed=bytes_accessed),
    )(xt, w1_bf16, b1_col, w2_col, b2)

    return out_row[0, :B][:, None]


def init_params(key, hidden):
    """Deterministic synthetic params with nn.Linear (torch) layouts."""
    k1, k2, k3, k4 = jax.random.split(key, 4)
    w1 = jax.random.normal(k1, (hidden, hidden), jnp.float32) / jnp.sqrt(hidden)
    b1 = jax.random.normal(k2, (hidden,), jnp.float32) * 0.01
    w2 = jax.random.normal(k3, (1, hidden), jnp.float32) / jnp.sqrt(hidden)
    b2 = jax.random.normal(k4, (1,), jnp.float32) * 0.01
    return w1, b1, w2, b2


def pack_params(w1, b1, w2, b2):
    """One-time re-layout of torch-shaped Linear params for the kernel."""
    return (
        w1.astype(jnp.bfloat16),   # (H, H)  fc1.weight, bf16 for the MXU
        b1.reshape(-1, 1),         # (H, 1)
        w2.reshape(-1, 1),         # (H, 1)  fc_final.weight^T
        b2.reshape(1, 1),          # (1, 1)  SMEM scalar
    )


def reference_forward(x, w1, b1, w2, b2):
    """Pure-JAX reference (eval-mode dropout == identity); mirrors the kernel's
    bf16 MXU inputs with f32 accumulation."""
    h = jnp.dot(x.astype(jnp.bfloat16), w1.astype(jnp.bfloat16).T,
                preferred_element_type=jnp.float32) + b1[None, :]
    h = jnp.maximum(h, 0.0)
    return jnp.sum(h * w2, axis=-1, keepdims=True) + b2[None, :]


if __name__ == "__main__":
    hidden = 32
    key = jax.random.PRNGKey(0)
    kx, kd, kp = jax.random.split(key, 3)

    w1, b1, w2, b2 = init_params(kp, hidden)
    kernel_params = pack_params(w1, b1, w2, b2)

    # batch=8: single-tile path; batch=300: tiled (TB=256) + zero-padded path.
    for batch in (8, 300):
        kxb, kdb = jax.random.split(jax.random.fold_in(kx, batch))
        x = jax.random.normal(kxb, (batch, hidden), jnp.float32)
        domain = jax.random.normal(kdb, (batch,), jnp.float32)

        out = domain_pred_forward(x, domain, *kernel_params)
        out = jax.block_until_ready(out)

        ref = reference_forward(x, w1, b1, w2, b2)
        assert out.shape == (batch, 1)
        assert jnp.allclose(out, ref, atol=1e-3, rtol=1e-3), float(
            jnp.max(jnp.abs(out - ref)))

    print("KERNEL_OK")
</pallas_src>

<mosaic_0001>
module attributes {stable_mosaic.version = 11 : i64} {
  func.func @domain_pred_kernel(%arg0: i32, %arg1: memref<32x8xf32, #tpu.memory_space<vmem>>, %arg2: memref<32x32xbf16, #tpu.memory_space<vmem>>, %arg3: memref<32x1xf32, #tpu.memory_space<vmem>>, %arg4: memref<32x1xf32, #tpu.memory_space<vmem>>, %arg5: memref<1x1xf32, #tpu.memory_space<smem>>, %arg6: memref<1x8xf32, #tpu.memory_space<vmem>>) attributes {dimension_semantics = [#tpu.dimension_semantics<parallel>], iteration_bounds = array<i64: 1>, scalar_prefetch = 0 : i64, scratch_operands = 0 : i64, tpu.core_type = #tpu.core_type<tc>, window_params = [{transform_indices = @transform_0, window_bounds = array<i64: 32, 8>}, {pipeline_mode = #tpu.pipeline_mode<synchronous>, transform_indices = @transform_1, window_bounds = array<i64: 32, 32>}, {pipeline_mode = #tpu.pipeline_mode<synchronous>, transform_indices = @transform_2, window_bounds = array<i64: 32, 1>}, {pipeline_mode = #tpu.pipeline_mode<synchronous>, transform_indices = @transform_3, window_bounds = array<i64: 32, 1>}, {transform_indices = @transform_4, window_bounds = array<i64: 1, 1>}, {transform_indices = @transform_5, window_bounds = array<i64: 1, 8>}]} {
    %c0 = arith.constant 0 : index
    %c0_0 = arith.constant 0 : index
    %0 = vector.load %arg1[%c0, %c0_0] : memref<32x8xf32, #tpu.memory_space<vmem>>, vector<32x8xf32>
    %1 = arith.truncf %0 : vector<32x8xf32> to vector<32x8xbf16>
    %c0_1 = arith.constant 0 : index
    %c0_2 = arith.constant 0 : index
    %2 = vector.load %arg2[%c0_1, %c0_2] : memref<32x32xbf16, #tpu.memory_space<vmem>>, vector<32x32xbf16>
    %cst = arith.constant dense<0.000000e+00> : vector<32x8xf32>
    %3 = tpu.matmul %2, %1, %cst {dimension_numbers = #tpu.dot_dimension_numbers<[1], [0], [0], [1], [0, 0, 1, 1], [], []>} : vector<32x32xbf16>, vector<32x8xbf16>, vector<32x8xf32> -> vector<32x8xf32>
    %c0_3 = arith.constant 0 : index
    %c0_4 = arith.constant 0 : index
    %4 = vector.load %arg3[%c0_3, %c0_4] : memref<32x1xf32, #tpu.memory_space<vmem>>, vector<32x1xf32>
    %5 = vector.broadcast %4 : vector<32x1xf32> to vector<32x8xf32>
    %6 = arith.addf %3, %5 : vector<32x8xf32>
    %cst_5 = arith.constant 0.000000e+00 : f32
    %7 = vector.broadcast %cst_5 : f32 to vector<32x8xf32>
    %8 = arith.maximumf %6, %7 : vector<32x8xf32>
    %c0_6 = arith.constant 0 : index
    %c0_7 = arith.constant 0 : index
    %9 = vector.load %arg4[%c0_6, %c0_7] : memref<32x1xf32, #tpu.memory_space<vmem>>, vector<32x1xf32>
    %10 = vector.broadcast %9 : vector<32x1xf32> to vector<32x8xf32>
    %11 = arith.mulf %8, %10 : vector<32x8xf32>
    %cst_8 = arith.constant dense<0.000000e+00> : vector<8xf32>
    %12 = vector.multi_reduction <add>, %11, %cst_8 [0] : vector<32x8xf32> to vector<8xf32>
    %13 = vector.shape_cast %12 : vector<8xf32> to vector<1x8xf32>
    %c0_9 = arith.constant 0 : index
    %c0_10 = arith.constant 0 : index
    %14 = memref.load %arg5[%c0_9, %c0_10] : memref<1x1xf32, #tpu.memory_space<smem>>
    %15 = vector.broadcast %14 : f32 to vector<1x8xf32>
    %16 = arith.addf %13, %15 : vector<1x8xf32>
    %c0_11 = arith.constant 0 : index
    %c0_12 = arith.constant 0 : index
    %17 = vector.load %arg6[%c0_11, %c0_12] : memref<1x8xf32, #tpu.memory_space<vmem>>, vector<1x8xf32>
    tpu.vector_store %arg6[%c0_11, %c0_12], %16 {strides = array<i32>} : memref<1x8xf32, #tpu.memory_space<vmem>>, vector<1x8xf32>,
    return
  }
  func.func @transform_0(%arg0: i32) -> (i32, i32) {
    %c0_i32 = arith.constant 0 : i32
    %c0_i32_0 = arith.constant 0 : i32
    return %c0_i32, %arg0 : i32, i32
  }
  func.func @transform_1(%arg0: i32) -> (i32, i32) {
    %c0_i32 = arith.constant 0 : i32
    %c0_i32_0 = arith.constant 0 : i32
    %c0_i32_1 = arith.constant 0 : i32
    return %c0_i32, %c0_i32_0 : i32, i32
  }
  func.func @transform_2(%arg0: i32) -> (i32, i32) {
    %c0_i32 = arith.constant 0 : i32
    %c0_i32_0 = arith.constant 0 : i32
    %c0_i32_1 = arith.constant 0 : i32
    return %c0_i32, %c0_i32_0 : i32, i32
  }
  func.func @transform_3(%arg0: i32) -> (i32, i32) {
    %c0_i32 = arith.constant 0 : i32
    %c0_i32_0 = arith.constant 0 : i32
    %c0_i32_1 = arith.constant 0 : i32
    return %c0_i32, %c0_i32_0 : i32, i32
  }
  func.func @transform_4(%arg0: i32) -> (i32, i32) {
    %c0_i32 = arith.constant 0 : i32
    %c0_i32_0 = arith.constant 0 : i32
    %c0_i32_1 = arith.constant 0 : i32
    return %c0_i32, %c0_i32_0 : i32, i32
  }
  func.func @transform_5(%arg0: i32) -> (i32, i32) {
    %c0_i32 = arith.constant 0 : i32
    %c0_i32_0 = arith.constant 0 : i32
    return %c0_i32, %arg0 : i32, i32
  }
}

</mosaic_0001>

<llo_original>
// kernel: tpu_custom_call.1
$region0: #{tpu_custom_call.1}
  #allocation0 [shape = 'u32[]', space=smem, size = 0x4, offset = 0x4, fixed_abs, tag = 'smem constant byte address 0x4 - core index']
  #allocation1 [shape = 'u32[144,128]{1,0:T(1,128)}', space=vmem, size = 0x12000, scoped, tag = 'internal scratch']
  #allocation2 [shape = 'f32[1,1]{1,0:T(1,128)S(6)}', space=smem, size = 0x200, scoped, tag = 'scoped memory for tpu_custom_call.1']
  %s0 = inlined_call_operand.vmem [shape: f32[32,8], index: 0, kind: input, shape index: {}]
  %s1 = inlined_call_operand.vmem [shape: bf16[32,32], index: 1, kind: input, shape index: {}]
  %s2 = inlined_call_operand.vmem [shape: f32[32,1], index: 2, kind: input, shape index: {}]
  %s3 = inlined_call_operand.vmem [shape: f32[32,1], index: 3, kind: input, shape index: {}]
  %s4 = inlined_call_operand.<no memory space> [shape: f32[1,1], index: 4, kind: input, shape index: {}]
  %s5 = inlined_call_operand.hbm [shape: f32[1,8], index: 5, kind: output, shape index: {}]
  %s6 = sld [smem:[#allocation0]]
  $region30: #{tpu_custom_call.1} parent=0
    _
  %s8 = ssub.s32 1, %s6
  %s9 = scalar_select 0, %s8, %s6
  %10 = sst [smem:[#allocation2]] %s4
  $region1: #{tpu_custom_call.1} parent=0
    #allocation3 [shape = 'u8[512]{0}', space=vmem, size = 0x400, scoped, tag = 'output window, operand 0, single buffered']
    #allocation4 [shape = 's32[1]{0}', space=sflag, size = 0x4, scoped, tag = 'scoped memory for tpu_custom_call.1']
    %11 = vsyncpa [#allocation4], 0
    // Predicated region
    $region2: #{tpu_custom_call.1} parent=1 // pred_check
      _
    $region3: #{tpu_custom_call.1} parent=1 // pred_check_branch
      %13 = sbr.rel (0) target = $region5
    $region4: #{tpu_custom_call.1} parent=1 // pred_region
      _
    $region5: #{tpu_custom_call.1} parent=1 // pred_fallthru
      _
    // Predicated region
    $region6: #{tpu_custom_call.1} parent=1 // pred_check
      _
    $region7: #{tpu_custom_call.1} parent=1 // pred_check_branch
      %15 = sbr.rel (0) target = $region9
    $region8: #{tpu_custom_call.1} parent=1 // pred_region
      _
    $region9: #{tpu_custom_call.1} parent=1 // pred_fallthru
      _
    // Predicated region
    $region10: #{tpu_custom_call.1} parent=1 // pred_check
      _
    $region11: #{tpu_custom_call.1} parent=1 // pred_check_branch
      %17 = sbr.rel (0) target = $region13
    $region12: #{tpu_custom_call.1} parent=1 // pred_region
      _
    $region13: #{tpu_custom_call.1} parent=1 // pred_fallthru
      _
    // Predicated region
    $region14: #{tpu_custom_call.1} parent=1 // pred_check
      _
    $region15: #{tpu_custom_call.1} parent=1 // pred_check_branch
      %19 = sbr.rel (0) target = $region17
    $region16: #{tpu_custom_call.1} parent=1 // pred_region
      _
    $region17: #{tpu_custom_call.1} parent=1 // pred_fallthru
      _
    // Predicated region
    $region18: #{tpu_custom_call.1} parent=1 // pred_check
      _
    $region19: #{tpu_custom_call.1} parent=1 // pred_check_branch
      %21 = sbr.rel (0) target = $region21
    $region20: #{tpu_custom_call.1} parent=1 // pred_region
      _
    $region21: #{tpu_custom_call.1} parent=1 // pred_fallthru
      _
    %v23 = vld [vmem:[%s0] sm:$0xff]
    %v24 = vld [vmem:[%s0 + $0x8] sm:$0xff]
    %v25 = vld [vmem:[%s0 + $0x10] sm:$0xff]
    %v26 = vld [vmem:[%s0 + $0x18] sm:$0xff]
    %v27 = vpack.c.bf16 %v24, %v23
    %v28 = vpack.c.bf16 %v26, %v25
    %v29 = vld [vmem:[%s1] sm:$0xf]
    %v30 = vld [vmem:[%s1 + $0x4] sm:$0xf]
    %v31 = vld [vmem:[%s1 + $0x8] sm:$0xf]
    %v32 = vld [vmem:[%s1 + $0xc] sm:$0xf]
    %v33 = vld [vmem:[%s2] sm:$0xff]
    %v34 = vld [vmem:[%s2 + $0x8] sm:$0xff]
    %v35 = vld [vmem:[%s2 + $0x10] sm:$0xff]
    %v36 = vld [vmem:[%s2 + $0x18] sm:$0xff]
    %38 = vset.pattern.permute.xlu0 0
    %39 = vperm.xlu0 %38, %v33
    %v40 = vpop.permute.xlu0 %39
    %43 = vset.pattern.permute.xlu0 0
    %44 = vperm.xlu0 %43, %v34
    %v45 = vpop.permute.xlu0 %44
    %48 = vset.pattern.permute.xlu0 0
    %49 = vperm.xlu0 %48, %v35
    %v50 = vpop.permute.xlu0 %49
    %53 = vset.pattern.permute.xlu0 0
    %54 = vperm.xlu0 %53, %v36
    %v55 = vpop.permute.xlu0 %54
    %v61 = vunpack.c.l.b16 %v29
    %v62 = vunpack.c.l.b16 %v30
    %v63 = vunpack.c.l.b16 %v31
    %v64 = vunpack.c.l.b16 %v32
    %v65 = vpack.c.b16 %v62, %v61
    %v66 = vpack.c.b16 %v64, %v63
    %vm67 = vcmask 261120
    %v69 = vsel %vm67, %v65, 0
    %v72 = vsel %vm67, %v66, 0
    %74 = vmatprep.subr.bf16.mxu0 0
    %75 = vmatpush1.bf16.msra.mxu0 0
    %76 = vmatprep.subr.bf16.mxu0 0
    %77 = vmatpush1.bf16.msra.mxu0 0
    %78 = vmatprep.subr.bf16.mxu0 0
    %79 = vmatpush1.bf16.msra.mxu0 0
    %80 = vmatprep.subr.bf16.mxu0 0
    %81 = vmatpush1.bf16.msra.mxu0 0
    %82 = vmatprep.subr.bf16.mxu0 0
    %83 = vmatpush1.bf16.msra.mxu0 0
    %84 = vmatprep.subr.bf16.mxu0 0
    %85 = vmatpush1.bf16.msra.mxu0 0
    %86 = vmatprep.subr.bf16.mxu0 0
    %87 = vmatpush1.bf16.msra.mxu0 %v28
    %88 = vmatprep.subr.bf16.mxu0 0
    %89 = vmatpush1.bf16.msra.mxu0 %v27
    %90 = vmatprep.subr.bf16.mxu0 0
    %91 = vmatpush2.bf16.msra.mxu0 0
    %92 = vmatprep.subr.bf16.mxu0 0
    %93 = vmatpush2.bf16.msra.mxu0 0
    %94 = vmatprep.subr.bf16.mxu0 0
    %95 = vmatpush2.bf16.msra.mxu0 0
    %96 = vmatprep.subr.bf16.mxu0 0
    %97 = vmatpush2.bf16.msra.mxu0 0
    %98 = vmatprep.subr.bf16.mxu0 0
    %99 = vmatpush2.bf16.msra.mxu0 0
    %100 = vmatprep.subr.bf16.mxu0 0
    %101 = vmatpush2.bf16.msra.mxu0 0
    %102 = vmatprep.subr.bf16.mxu0 0
    %103 = vmatpush2.bf16.msra.mxu0 0
    %104 = vmatprep.subr.bf16.mxu0 0
    %105 = vmatpush2.bf16.msra.mxu0 0
    %106 = vmatprep.mubr.bf16.mxu0 0
    %107 = vmatmul.mubr.bf16.gmra.mxu0 %v69
    %v108 = vpop.f32.mrf.mxu0
    %v109 = vadd.f32 %v40, %v108
    %v110 = vpop.f32.mrf.mxu0
    %v111 = vpop.f32.mrf.mxu0
    %v112 = vadd.f32 %v45, %v111
    %v113 = vpop.f32.mrf.mxu0
    %114 = vmatprep.mubr.bf16.mxu0 0
    %115 = vmatmul.mubr.bf16.gmra.mxu0 %v72
    %v116 = vpop.f32.mrf.mxu0
    %v117 = vadd.f32 %v50, %v116
    %v118 = vpop.f32.mrf.mxu0
    %v119 = vpop.f32.mrf.mxu0
    %v120 = vadd.f32 %v55, %v119
    %v121 = vpop.f32.mrf.mxu0
    %122 = vdwg.mxu0
    %v123 = vmax.f32 %v109, 0.0
    %v124 = vmax.f32 %v112, 0.0
    %v125 = vmax.f32 %v117, 0.0
    %v126 = vmax.f32 %v120, 0.0
    %v127 = vld [vmem:[%s3] sm:$0xff]
    %v128 = vld [vmem:[%s3 + $0x8] sm:$0xff]
    %v129 = vld [vmem:[%s3 + $0x10] sm:$0xff]
    %v130 = vld [vmem:[%s3 + $0x18] sm:$0xff]
    %132 = vset.pattern.permute.xlu0 0
    %133 = vperm.xlu0 %132, %v127
    %v134 = vpop.permute.xlu0 %133
    %137 = vset.pattern.permute.xlu0 0
    %138 = vperm.xlu0 %137, %v128
    %v139 = vpop.permute.xlu0 %138
    %142 = vset.pattern.permute.xlu0 0
    %143 = vperm.xlu0 %142, %v129
    %v144 = vpop.permute.xlu0 %143
    %147 = vset.pattern.permute.xlu0 0
    %148 = vperm.xlu0 %147, %v130
    %v149 = vpop.permute.xlu0 %148
    %v151 = vmul.f32 %v123, %v134
    %v152 = vmul.f32 %v124, %v139
    %v153 = vmul.f32 %v125, %v144
    %v154 = vmul.f32 %v126, %v149
    %vm155 = vcmask 64512
    %v156 = vsel %vm155, %v151, 0.0
    %v157 = vsel %vm155, %v152, 0.0
    %v158 = vadd.f32 %v156, %v157
    %v159 = vsel %vm155, %v153, 0.0
    %v160 = vadd.f32 %v158, %v159
    %v161 = vsel %vm155, %v154, 0.0
    %v162 = vadd.f32 %v160, %v161
    %v163 = vrot.slane %v162, 4
    %v164 = vadd.f32 %v162, %v163
    %v165 = vrot.slane %v164, 2
    %v166 = vadd.f32 %v164, %v165
    %v167 = vrot.slane %v166, 1
    %v168 = vadd.f32 %v166, %v167
    %s169 = sld [smem:[#allocation2]]
    %v170 = vstv %s169
    %v171 = vadd.f32 %v168, %v170
    %vm172 = vcmask 57344
    %173 = vst.msk [vmem:[#allocation3] sm:$0x1] %vm172, %v171
    // Predicated region
    $region22: #{tpu_custom_call.1} parent=1 // pred_check
      _
    $region23: #{tpu_custom_call.1} parent=1 // pred_check_branch
      %175 = sbr.rel (0) target = $region25
    $region24: #{tpu_custom_call.1} parent=1 // pred_region
      %s177 = ssub.s32 16, 16
      %178 = vsyncadd [#allocation4], %s177
      %s180 = sshll.u32 [#allocation3], 4
      %s181 = int_to_ptr.vmem [resolvable:$true] %s180
      %183 = dma.vmem_to_hbm [thread:$0]  %s181, 16, %s5, [#allocation4]
    $region25: #{tpu_custom_call.1} parent=1 // pred_fallthru
      _
    // Predicated region
    $region26: #{tpu_custom_call.1} parent=1 // pred_check
      _
    $region27: #{tpu_custom_call.1} parent=1 // pred_check_branch
      %185 = sbr.rel (0) target = $region29
    $region28: #{tpu_custom_call.1} parent=1 // pred_region
      %186 = dma.done [#allocation4], 16
    $region29: #{tpu_custom_call.1} parent=1 // pred_fallthru
      _
    %187 = vsyncpa [#allocation4], 1

</llo_original>
